<compile_context>
chip_gen: v5e
topology: v5e:2x2
jax: 0.10.0
libtpu: 0.0.40
codegen_flags: <defaults>
</compile_context>

<pallas_src>
import math

import jax
import jax.numpy as jnp
from jax.experimental import pallas as pl
from jax.experimental.pallas import tpu as pltpu


def _round_up(x, m):
    return ((x + m - 1) // m) * m


def _cdiv(a, b):
    return -(-a // b)


def jodie_time_emb_kernel(h_ref, t_ref, wb_ref, o_ref):
    # h_ref:  (TN, D)   node embeddings (any float dtype)
    # t_ref:  (TN, 2)   col 0 = mem_ts, col 1 = ts            (f32)
    # wb_ref: (2, D)    row 0 = weight, row 1 = bias + 1       (f32, grid-invariant)
    # o_ref:  (TN, D)
    mem_ts = t_ref[:, 0:1]                       # (TN, 1)
    ts = t_ref[:, 1:2]                           # (TN, 1)
    td = (ts - mem_ts) / (ts + 1.0)              # (TN, 1) f32
    w = wb_ref[0:1, :]                           # (1, D)  f32
    b1 = wb_ref[1:2, :]                          # (1, D)  f32  (= bias + 1)
    scale = td * w + b1                          # (TN, D) f32, VPU broadcast-FMA
    o_ref[...] = (h_ref[...] * scale.astype(h_ref.dtype)).astype(o_ref.dtype)


def _vmem_limits():
    phys = 64 * 1024 * 1024                      # conservative default (v7x per-TC physical)
    try:
        info = pltpu.get_tpu_info()
        phys = int(getattr(info, "vmem_capacity_bytes", phys))
    except Exception:
        pass
    # ~60% of physical: v7x (64 MiB) -> ~38 MiB, v5e/v6e (128 MiB) -> ~76 MiB.
    limit = min(max(phys * 3 // 5, 32 * 1024 * 1024), 96 * 1024 * 1024)
    budget = limit - 6 * 1024 * 1024             # headroom: internal scratch, small blocks
    return budget, limit


def jodie_time_embedding(h, mem_ts, ts, weight, bias):
    """h: (N, D); mem_ts, ts: (N,); weight: (D, 1); bias: (D,). Returns (N, D)."""
    N, D = h.shape
    out_dtype = h.dtype
    if N == 0:
        return jnp.zeros((0, D), dtype=out_dtype)

    vmem_budget, vmem_limit = _vmem_limits()

    # --- Row-tile size: dtype-aware, sized to sit on the HBM-roofline plateau ---
    d_lanes = _round_up(D, 128)                                   # VMEM lane padding
    bytes_per_row = (2 * h.dtype.itemsize + 2 * out_dtype.itemsize) * d_lanes \
        + 2 * 128 * 4                                             # + lane-padded (TN,2) ts block
    wb_bytes = 2 * 8 * d_lanes * 4                                # sublane-padded wb, <=2 buffers
    tile_n = (max(vmem_budget - wb_bytes, 8 * bytes_per_row) // bytes_per_row) // 8 * 8
    tile_n = max(8, min(tile_n, 1024))                            # >=512 rows ~ 85% of roofline

    if N >= 16:
        # At least 2 grid steps, and an even step count so v7x's two TensorCores
        # (dimension_semantics="parallel") get balanced work.
        tile_n = min(tile_n, _round_up(_cdiv(N, 2), 8))
        steps = _round_up(_cdiv(N, tile_n), 2)
        tile_n = max(8, _round_up(_cdiv(N, steps), 8))
    else:
        tile_n = _round_up(max(N, 1), 8)
    # Partial trailing block handles ragged N: OOB reads padded, OOB writes dropped.
    grid_steps = _cdiv(N, tile_n)

    # --- Small side inputs only (O(N) / O(D)); no copies of the (N, D) tensors ---
    t2 = jnp.stack([mem_ts.astype(jnp.float32), ts.astype(jnp.float32)], axis=1)  # (N, 2)
    w_row = weight.reshape(1, D).astype(jnp.float32)
    b1_row = bias.reshape(1, D).astype(jnp.float32) + 1.0          # fold the "+1" here
    wb = jnp.concatenate([w_row, b1_row], axis=0)                  # (2, D)

    def _run(wb_spec):
        return pl.pallas_call(
            jodie_time_emb_kernel,
            out_shape=jax.ShapeDtypeStruct((N, D), out_dtype),
            grid_spec=pltpu.PrefetchScalarGridSpec(
                num_scalar_prefetch=0,
                grid=(grid_steps,),
                in_specs=[
                    pl.BlockSpec((tile_n, D), lambda i: (i, 0)),   # h
                    pl.BlockSpec((tile_n, 2), lambda i: (i, 0)),   # [mem_ts | ts]
                    wb_spec,                                       # [weight ; bias+1]
                ],
                out_specs=pl.BlockSpec((tile_n, D), lambda i: (i, 0)),
            ),
            compiler_params=pltpu.CompilerParams(
                dimension_semantics=("parallel",),
                vmem_limit_bytes=vmem_limit,
            ),
        )(h, t2, wb)

    try:
        # Grid-invariant block -> single buffer (saves one 8 x D x 4 B buffer + a DMA).
        return _run(pl.BlockSpec((2, D), lambda i: (0, 0), pipeline_mode=pl.Buffered(1)))
    except Exception:
        return _run(pl.BlockSpec((2, D), lambda i: (0, 0)))


def reference(h, mem_ts, ts, weight, bias):
    td = (ts - mem_ts) / (ts + 1.0)
    emb = td[:, None] * weight.reshape(1, -1) + bias.reshape(1, -1)
    return h * (1.0 + emb)


if __name__ == "__main__":
    key = jax.random.PRNGKey(0)
    N, D = 16, 32  # small demo: batch of nodes, dim_out

    k_h, k_mts, k_ts, k_w, k_b = jax.random.split(key, 5)
    h = jax.random.normal(k_h, (N, D), dtype=jnp.float32)
    mem_ts = jax.random.uniform(k_mts, (N,), dtype=jnp.float32, minval=0.0, maxval=10.0)
    ts = mem_ts + jax.random.uniform(k_ts, (N,), dtype=jnp.float32, minval=0.0, maxval=5.0)

    # NormalLinear init: stdv = 1/sqrt(in_features) = 1.0; weight (D, 1), bias (D,)
    stdv = 1.0 / math.sqrt(1.0)
    weight = stdv * jax.random.normal(k_w, (D, 1), dtype=jnp.float32)
    bias = stdv * jax.random.normal(k_b, (D,), dtype=jnp.float32)

    out = jodie_time_embedding(h, mem_ts, ts, weight, bias)
    out = jax.block_until_ready(out)

    ref = reference(h, mem_ts, ts, weight, bias)
    assert out.shape == (N, D)
    assert jnp.allclose(out, ref, atol=1e-5, rtol=1e-5), "mismatch vs reference"

    print("KERNEL_OK")
</pallas_src>

<mosaic_0001>
module attributes {stable_mosaic.version = 11 : i64} {
  func.func @jodie_time_emb_kernel(%arg0: i32, %arg1: memref<8x32xf32, #tpu.memory_space<vmem>>, %arg2: memref<8x2xf32, #tpu.memory_space<vmem>>, %arg3: memref<2x32xf32, #tpu.memory_space<vmem>>, %arg4: memref<8x32xf32, #tpu.memory_space<vmem>>) attributes {dimension_semantics = [#tpu.dimension_semantics<parallel>], iteration_bounds = array<i64: 2>, scalar_prefetch = 0 : i64, scratch_operands = 0 : i64, tpu.core_type = #tpu.core_type<tc>, window_params = [{transform_indices = @transform_0, window_bounds = array<i64: 8, 32>}, {transform_indices = @transform_1, window_bounds = array<i64: 8, 2>}, {pipeline_mode = #tpu.pipeline_mode<synchronous>, transform_indices = @transform_2, window_bounds = array<i64: 2, 32>}, {transform_indices = @transform_3, window_bounds = array<i64: 8, 32>}]} {
    %c0 = arith.constant 0 : index
    %c0_0 = arith.constant 0 : index
    %0 = vector.load %arg2[%c0, %c0_0] : memref<8x2xf32, #tpu.memory_space<vmem>>, vector<8x1xf32>
    %c0_1 = arith.constant 0 : index
    %c1 = arith.constant 1 : index
    %1 = vector.load %arg2[%c0_1, %c1] : memref<8x2xf32, #tpu.memory_space<vmem>>, vector<8x1xf32>
    %2 = arith.subf %1, %0 : vector<8x1xf32>
    %cst = arith.constant 1.000000e+00 : f32
    %3 = vector.broadcast %cst : f32 to vector<8x1xf32>
    %4 = arith.addf %1, %3 : vector<8x1xf32>
    %5 = arith.divf %2, %4 : vector<8x1xf32>
    %c0_2 = arith.constant 0 : index
    %c0_3 = arith.constant 0 : index
    %6 = vector.load %arg3[%c0_2, %c0_3] : memref<2x32xf32, #tpu.memory_space<vmem>>, vector<1x32xf32>
    %c1_4 = arith.constant 1 : index
    %c0_5 = arith.constant 0 : index
    %7 = vector.load %arg3[%c1_4, %c0_5] : memref<2x32xf32, #tpu.memory_space<vmem>>, vector<1x32xf32>
    %8 = vector.broadcast %5 : vector<8x1xf32> to vector<8x32xf32>
    %9 = vector.broadcast %6 : vector<1x32xf32> to vector<8x32xf32>
    %10 = arith.mulf %8, %9 : vector<8x32xf32>
    %11 = vector.broadcast %7 : vector<1x32xf32> to vector<8x32xf32>
    %12 = arith.addf %10, %11 : vector<8x32xf32>
    %c0_6 = arith.constant 0 : index
    %c0_7 = arith.constant 0 : index
    %13 = vector.load %arg1[%c0_6, %c0_7] : memref<8x32xf32, #tpu.memory_space<vmem>>, vector<8x32xf32>
    %14 = arith.mulf %13, %12 : vector<8x32xf32>
    %c0_8 = arith.constant 0 : index
    %c0_9 = arith.constant 0 : index
    %15 = vector.load %arg4[%c0_8, %c0_9] : memref<8x32xf32, #tpu.memory_space<vmem>>, vector<8x32xf32>
    tpu.vector_store %arg4[%c0_8, %c0_9], %14 {strides = array<i32>} : memref<8x32xf32, #tpu.memory_space<vmem>>, vector<8x32xf32>,
    return
  }
  func.func @transform_0(%arg0: i32) -> (i32, i32) {
    %c0_i32 = arith.constant 0 : i32
    %c0_i32_0 = arith.constant 0 : i32
    return %arg0, %c0_i32 : i32, i32
  }
  func.func @transform_1(%arg0: i32) -> (i32, i32) {
    %c0_i32 = arith.constant 0 : i32
    %c0_i32_0 = arith.constant 0 : i32
    return %arg0, %c0_i32 : i32, i32
  }
  func.func @transform_2(%arg0: i32) -> (i32, i32) {
    %c0_i32 = arith.constant 0 : i32
    %c0_i32_0 = arith.constant 0 : i32
    %c0_i32_1 = arith.constant 0 : i32
    return %c0_i32, %c0_i32_0 : i32, i32
  }
  func.func @transform_3(%arg0: i32) -> (i32, i32) {
    %c0_i32 = arith.constant 0 : i32
    %c0_i32_0 = arith.constant 0 : i32
    return %arg0, %c0_i32 : i32, i32
  }
}

module attributes {stable_mosaic.version = 11 : i64} {
  func.func @jodie_time_emb_kernel(%arg0: i32, %arg1: memref<8x32xf32, #tpu.memory_space<vmem>>, %arg2: memref<8x2xf32, #tpu.memory_space<vmem>>, %arg3: memref<2x32xf32, #tpu.memory_space<vmem>>, %arg4: memref<8x32xf32, #tpu.memory_space<vmem>>) attributes {dimension_semantics = [#tpu.dimension_semantics<parallel>], iteration_bounds = array<i64: 2>, scalar_prefetch = 0 : i64, scratch_operands = 0 : i64, tpu.core_type = #tpu.core_type<tc>, window_params = [{transform_indices = @transform_0, window_bounds = array<i64: 8, 32>}, {transform_indices = @transform_1, window_bounds = array<i64: 8, 2>}, {pipeline_mode = #tpu.pipeline_mode<synchronous>, transform_indices = @transform_2, window_bounds = array<i64: 2, 32>}, {transform_indices = @transform_3, window_bounds = array<i64: 8, 32>}]} {
    %c0 = arith.constant 0 : index
    %c0_0 = arith.constant 0 : index
    %0 = vector.load %arg2[%c0, %c0_0] : memref<8x2xf32, #tpu.memory_space<vmem>>, vector<8x1xf32>
    %c0_1 = arith.constant 0 : index
    %c1 = arith.constant 1 : index
    %1 = vector.load %arg2[%c0_1, %c1] : memref<8x2xf32, #tpu.memory_space<vmem>>, vector<8x1xf32>
    %2 = arith.subf %1, %0 : vector<8x1xf32>
    %cst = arith.constant 1.000000e+00 : f32
    %3 = vector.broadcast %cst : f32 to vector<8x1xf32>
    %4 = arith.addf %1, %3 : vector<8x1xf32>
    %5 = arith.divf %2, %4 : vector<8x1xf32>
    %c0_2 = arith.constant 0 : index
    %c0_3 = arith.constant 0 : index
    %6 = vector.load %arg3[%c0_2, %c0_3] : memref<2x32xf32, #tpu.memory_space<vmem>>, vector<1x32xf32>
    %c1_4 = arith.constant 1 : index
    %c0_5 = arith.constant 0 : index
    %7 = vector.load %arg3[%c1_4, %c0_5] : memref<2x32xf32, #tpu.memory_space<vmem>>, vector<1x32xf32>
    %8 = vector.broadcast %5 : vector<8x1xf32> to vector<8x32xf32>
    %9 = vector.broadcast %6 : vector<1x32xf32> to vector<8x32xf32>
    %10 = arith.mulf %8, %9 : vector<8x32xf32>
    %11 = vector.broadcast %7 : vector<1x32xf32> to vector<8x32xf32>
    %12 = arith.addf %10, %11 : vector<8x32xf32>
    %c0_6 = arith.constant 0 : index
    %c0_7 = arith.constant 0 : index
    %13 = vector.load %arg1[%c0_6, %c0_7] : memref<8x32xf32, #tpu.memory_space<vmem>>, vector<8x32xf32>
    %14 = arith.mulf %13, %12 : vector<8x32xf32>
    %c0_8 = arith.constant 0 : index
    %c0_9 = arith.constant 0 : index
    %15 = vector.load %arg4[%c0_8, %c0_9] : memref<8x32xf32, #tpu.memory_space<vmem>>, vector<8x32xf32>
    tpu.vector_store %arg4[%c0_8, %c0_9], %14 {strides = array<i32>} : memref<8x32xf32, #tpu.memory_space<vmem>>, vector<8x32xf32>,
    return
  }
  func.func @transform_0(%arg0: i32) -> (i32, i32) {
    %c0_i32 = arith.constant 0 : i32
    %c0_i32_0 = arith.constant 0 : i32
    return %arg0, %c0_i32 : i32, i32
  }
  func.func @transform_1(%arg0: i32) -> (i32, i32) {
    %c0_i32 = arith.constant 0 : i32
    %c0_i32_0 = arith.constant 0 : i32
    return %arg0, %c0_i32 : i32, i32
  }
  func.func @transform_2(%arg0: i32) -> (i32, i32) {
    %c0_i32 = arith.constant 0 : i32
    %c0_i32_0 = arith.constant 0 : i32
    %c0_i32_1 = arith.constant 0 : i32
    return %c0_i32, %c0_i32_0 : i32, i32
  }
  func.func @transform_3(%arg0: i32) -> (i32, i32) {
    %c0_i32 = arith.constant 0 : i32
    %c0_i32_0 = arith.constant 0 : i32
    return %arg0, %c0_i32 : i32, i32
  }
}

</mosaic_0001>

<llo_original>
// kernel: tpu_custom_call.1
$region0: #{tpu_custom_call.1}
  #allocation0 [shape = 'u32[]', space=smem, size = 0x4, offset = 0x4, fixed_abs, tag = 'smem constant byte address 0x4 - core index']
  #allocation1 [shape = 'u32[72,128]{1,0:T(1,128)}', space=vmem, size = 0x9000, scoped, tag = 'internal scratch']
  %s0 = inlined_call_operand.vmem [shape: f32[16,32], index: 0, kind: input, shape index: {}]
  %s1 = inlined_call_operand.vmem [shape: f32[16,2], index: 1, kind: input, shape index: {}]
  %s2 = inlined_call_operand.vmem [shape: f32[2,32], index: 2, kind: input, shape index: {}]
  %s3 = inlined_call_operand.hbm [shape: f32[16,32], index: 3, kind: output, shape index: {}]
  %s4 = sld [smem:[#allocation0]]
  $region45: #{tpu_custom_call.1} parent=0
    _
  %s6 = ssub.s32 1, %s4
  %s7 = scalar_select 0, %s6, %s4
  $region1: #{tpu_custom_call.1} parent=0
    #allocation2 [shape = 'u8[8192]{0}', space=vmem, size = 0x2000, scoped, tag = 'output window, operand 0']
    #allocation3 [shape = 's32[2]{0}', space=sflag, size = 0x8, scoped, tag = 'scoped memory for tpu_custom_call.1']
    %8 = vsyncpa [#allocation3], 0
    %s9 = scalar_lea.sflag [#allocation3], 1
    %10 = vsyncpa %s9, 0
    loop: start=0, step=1, limit=4
    $region2: #{tpu_custom_call.1} parent=1 // loop_pre_header
      _
    $region3: #{tpu_custom_call.1} parent=1 // loop_header
      %s12 = sphi 0, %s16
      %p13 = scmp.ge.s32.totalorder %s12, 4
      %s22 = sphi 0, %s24
      %s25 = sphi 0, %s22
      %s26 = sphi 0, %s25
      %s42 = sphi 0, %s26
      %s48 = sphi 0, %s50
      %s51 = sphi 0, %s48
      %s52 = sphi 0, %s51
      %s68 = sphi 0, %s52
      %s72 = sphi 0, %s72
      %s74 = sphi 0, %s72
      %s75 = sphi 0, %s74
      %s89 = sphi 0, %s75
      %s95 = sphi 0, %s97
      %s98 = sphi 0, %s95
      %s99 = sphi 0, %s98
      %s115 = sphi 0, %s99
    $region4: #{tpu_custom_call.1} parent=1 // loop_header_branch
      %15 = sbr.rel (%p13) target = $region8
    $region5: #{tpu_custom_call.1} parent=1 // loop_body
      %s17 = ssub.s32 %s12, 1
      %s18 = ssub.s32 %s12, 2
      %s19 = sadd.s32 %s12, 1
      %s20 = ssub.s32 %s12, %s19
      %p21 = scmp.eq.s32.totalorder %s20, 0
      %s23 = sadd.s32 %s22, 1
      %s24 = scalar_select %p21, %s22, %s23
      %p27 = pneg %p21
      %p28 = scmp.eq.s32.totalorder %s12, 1
      %p29 = por %p27, %p28
      %p30 = scmp.ne.s32.totalorder %s22, %s25
      %p31 = scmp.eq.s32.totalorder %s12, 0
      %p32 = por %p30, %p31
      %p33 = scmp.ne.s32.totalorder %s22, %s25
      %p34 = scmp.eq.s32.totalorder %s17, 1
      %p35 = por %p33, %p34
      %p36 = scmp.ne.s32.totalorder %s25, %s26
      %p37 = scmp.eq.s32.totalorder %s17, 0
      %p38 = por %p36, %p37
      %p39 = scmp.ne.s32.totalorder %s25, %s26
      %p40 = scmp.eq.s32.totalorder %s18, 1
      %p41 = por %p39, %p40
      %p43 = scmp.ne.s32.totalorder %s26, %s42
      %p44 = scmp.eq.s32.totalorder %s18, 0
      %p45 = por %p43, %p44
      %s46 = ssub.s32 %s12, %s19
      %p47 = scmp.eq.s32.totalorder %s46, 0
      %s49 = sadd.s32 %s48, 1
      %s50 = scalar_select %p47, %s48, %s49
      %p53 = pneg %p47
      %p54 = scmp.eq.s32.totalorder %s12, 1
      %p55 = por %p53, %p54
      %p56 = scmp.ne.s32.totalorder %s48, %s51
      %p57 = scmp.eq.s32.totalorder %s12, 0
      %p58 = por %p56, %p57
      %p59 = scmp.ne.s32.totalorder %s48, %s51
      %p60 = scmp.eq.s32.totalorder %s17, 1
      %p61 = por %p59, %p60
      %p62 = scmp.ne.s32.totalorder %s51, %s52
      %p63 = scmp.eq.s32.totalorder %s17, 0
      %p64 = por %p62, %p63
      %p65 = scmp.ne.s32.totalorder %s51, %s52
      %p66 = scmp.eq.s32.totalorder %s18, 1
      %p67 = por %p65, %p66
      %p69 = scmp.ne.s32.totalorder %s52, %s68
      %p70 = scmp.eq.s32.totalorder %s18, 0
      %p71 = por %p69, %p70
      %s73 = sadd.s32 %s72, 1
      %p76 = scmp.eq.s32.totalorder %s12, 1
      %p77 = scmp.ne.s32.totalorder %s72, %s74
      %p78 = scmp.eq.s32.totalorder %s12, 0
      %p79 = por %p77, %p78
      %p80 = scmp.ne.s32.totalorder %s72, %s74
      %p81 = scmp.eq.s32.totalorder %s17, 1
      %p82 = por %p80, %p81
      %p83 = scmp.ne.s32.totalorder %s74, %s75
      %p84 = scmp.eq.s32.totalorder %s17, 0
      %p85 = por %p83, %p84
      %p86 = scmp.ne.s32.totalorder %s74, %s75
      %p87 = scmp.eq.s32.totalorder %s18, 1
      %p88 = por %p86, %p87
      %p90 = scmp.ne.s32.totalorder %s75, %s89
      %p91 = scmp.eq.s32.totalorder %s18, 0
      %p92 = por %p90, %p91
      %s93 = ssub.s32 %s12, %s19
      %p94 = scmp.eq.s32.totalorder %s93, 0
      %s96 = sadd.s32 %s95, 1
      %s97 = scalar_select %p94, %s95, %s96
      %p100 = pneg %p94
      %p101 = scmp.eq.s32.totalorder %s12, 1
      %p102 = por %p100, %p101
      %p103 = scmp.ne.s32.totalorder %s95, %s98
      %p104 = scmp.eq.s32.totalorder %s12, 0
      %p105 = por %p103, %p104
      %p106 = scmp.ne.s32.totalorder %s95, %s98
      %p107 = scmp.eq.s32.totalorder %s17, 1
      %p108 = por %p106, %p107
      %p109 = scmp.ne.s32.totalorder %s98, %s99
      %p110 = scmp.eq.s32.totalorder %s17, 0
      %p111 = por %p109, %p110
      %p112 = scmp.ne.s32.totalorder %s98, %s99
      %p113 = scmp.eq.s32.totalorder %s18, 1
      %p114 = por %p112, %p113
      %p116 = scmp.ne.s32.totalorder %s99, %s115
      %p117 = scmp.eq.s32.totalorder %s18, 0
      %p118 = por %p116, %p117
      %p119 = scmp.le.s32.totalorder 1, %s12
      %p120 = scmp.lt.s32.totalorder %s12, 3
      %p121 = pnand %p119, %p120
      %p122 = pneg %p121
      // Predicated region
      $region9: #{tpu_custom_call.1} parent=5 // pred_check
        _
      $region10: #{tpu_custom_call.1} parent=5 // pred_check_branch
        %124 = sbr.rel (%p121) target = $region12
      $region11: #{tpu_custom_call.1} parent=5 // pred_region
        %s125 = ssub.s32 %s12, 1
        // Predicated region
        $region13: #{tpu_custom_call.1} parent=11 // pred_check
          %p126 = pneg %p85
        $region14: #{tpu_custom_call.1} parent=11 // pred_check_branch
          %128 = sbr.rel (%p126) target = $region16
        $region15: #{tpu_custom_call.1} parent=11 // pred_region
          _
        $region16: #{tpu_custom_call.1} parent=11 // pred_fallthru
          _
      $region12: #{tpu_custom_call.1} parent=5 // pred_fallthru
        _
      %p129 = scmp.lt.s32.totalorder %s12, 2
      // Predicated region
      $region17: #{tpu_custom_call.1} parent=5 // pred_check
        %p130 = pneg %p129
      $region18: #{tpu_custom_call.1} parent=5 // pred_check_branch
        %132 = sbr.rel (%p130) target = $region20
      $region19: #{tpu_custom_call.1} parent=5 // pred_region
        // Predicated region
        $region21: #{tpu_custom_call.1} parent=19 // pred_check
          %p133 = pneg %p32
        $region22: #{tpu_custom_call.1} parent=19 // pred_check_branch
          %135 = sbr.rel (%p133) target = $region24
        $region23: #{tpu_custom_call.1} parent=19 // pred_region
          %p136 = scmp.lt.s32.totalorder %s12, 1
          %s137 = scalar_select %p136, %s12, 1
          %s138 = smul.addr %s137, 8
          %s139 = scalar_lea.vmem %s0, %s138
        $region24: #{tpu_custom_call.1} parent=19 // pred_fallthru
          _
        // Predicated region
        $region25: #{tpu_custom_call.1} parent=19 // pred_check
          %p140 = pneg %p58
        $region26: #{tpu_custom_call.1} parent=19 // pred_check_branch
          %142 = sbr.rel (%p140) target = $region28
        $region27: #{tpu_custom_call.1} parent=19 // pred_region
          %p143 = scmp.lt.s32.totalorder %s12, 1
          %s144 = scalar_select %p143, %s12, 1
          %s145 = smul.addr %s144, 8
          %s146 = scalar_lea.vmem %s1, %s145
        $region28: #{tpu_custom_call.1} parent=19 // pred_fallthru
          _
      $region20: #{tpu_custom_call.1} parent=5 // pred_fallthru
        _
      %p147 = scmp.le.s32.totalorder 1, %s12
      %p148 = scmp.lt.s32.totalorder %s12, 3
      %p149 = pnand %p147, %p148
      %p150 = pneg %p149
      // Predicated region
      $region29: #{tpu_custom_call.1} parent=5 // pred_check
        _
      $region30: #{tpu_custom_call.1} parent=5 // pred_check_branch
        %152 = sbr.rel (%p149) target = $region32
      $region31: #{tpu_custom_call.1} parent=5 // pred_region
        %s153 = ssub.s32 %s12, 1
        %p154 = scmp.lt.s32.totalorder %s17, 1
        %s155 = scalar_select %p154, %s17, 1
        %s156 = smul.addr %s155, 8
        %s157 = scalar_lea.vmem %s0, %s156
        %p158 = pneg %p38
        %p159 = pneg %p35
        %p160 = scmp.lt.s32.totalorder %s17, 1
        %s161 = scalar_select %p160, %s17, 1
        %s162 = smul.addr %s161, 8
        %s163 = scalar_lea.vmem %s1, %s162
        %p164 = pneg %p64
        %p165 = pneg %p61
        %p166 = pneg %p85
        %p167 = pneg %p82
        %p168 = pneg %p111
        %p169 = pneg %p108
        %s170 = sand.u32 %s98, 1
        %s171 = scalar_lea.sflag [#allocation3], %s170
        %s172 = sand.u32 %s98, 1
        %s173 = smul.addr %s172, 8
        %s174 = scalar_lea.vmem [#allocation2], %s173
        %p175 = scmp.lt.s32.totalorder %s17, 1
        %s176 = scalar_select %p175, %s17, 1
        %s177 = smul.addr %s176, 8
        %s178 = scalar_lea.vmem %s0, %s177
        %p179 = scmp.lt.s32.totalorder %s17, 1
        %s180 = scalar_select %p179, %s17, 1
        %s181 = smul.addr %s180, 8
        %s182 = scalar_lea.vmem %s1, %s181
        %v183 = vld [vmem:[%s182] sm:$0xff]
        %185 = vrot.lane.b32.xlu0 %v183, 1
        %v186 = vpop.permute.xlu0 %185
        %v188 = vsub.f32 %v183, %v186
        %v189 = vadd.f32 %v183, 1.0
        %v190 = vrcp.pop %v189
        %v191 = vmul.f32 %v189, %v190
        %v192 = vsub.f32 1.0, %v191
        %v193 = vmul.f32 %v190, %v192
        %v194 = vadd.f32 %v190, %v193
        %vm195 = vweird.f32 %v189
        %vm196 = vweird.f32 %v190
        %vm197 = vmor %vm195, %vm196
        %v198 = vsel %vm197, %v190, %v194
        %v199 = vand.u32 2147483647, %v189
        %vm200 = vcmp.eq.f32.partialorder %v199, 8.507059e+37
        %v201 = vand.u32 %v189, 2147483648
        %v202 = vor.u32 1.1754944e-38, %v201
        %v203 = vsel %vm200, %v202, %v198
        %v204 = vmul.f32 %v188, %v203
        %v205 = vld [vmem:[%s2] sm:$0x1]
        %v206 = vld [vmem:[%s2 + $0x1] sm:$0x1]
        %208 = vset.pattern.permute.xlu0 1
        %209 = vperm.xlu0 %208, %v204
        %v210 = vpop.permute.xlu0 %209
        %v212 = vperm.slane %v205, 0
        %v213 = vmul.f32 %v210, %v212
        %v214 = vperm.slane %v206, 0
        %v215 = vadd.f32 %v213, %v214
        %v216 = vld [vmem:[%s178] sm:$0xff]
        %v217 = vmul.f32 %v216, %v215
        %vm218 = vcmask 261120
        %219 = vst.msk [vmem:[%s174] sm:$0xff] %vm218, %v217
        %s220 = sand.u32 %s98, 1
        %s221 = scalar_lea.sflag [#allocation3], %s220
        %s222 = sand.u32 %s98, 1
        %s223 = smul.addr %s222, 8
        %s224 = scalar_lea.vmem [#allocation2], %s223
        // Predicated region
        $region33: #{tpu_custom_call.1} parent=31 // pred_check
          %p225 = pneg %p108
        $region34: #{tpu_custom_call.1} parent=31 // pred_check_branch
          %227 = sbr.rel (%p225) target = $region36
        $region35: #{tpu_custom_call.1} parent=31 // pred_region
          %229 = vsyncadd %s221, 0
          %s230 = smul.addr %s17, 8
          %s231 = scalar_lea.hbm %s3, %s230
          %s233 = sshll.u32 %s224, 4
          %s234 = int_to_ptr.vmem [resolvable:$true] %s233
          %s235 = sshll.u32 %s231, 4
          %s236 = int_to_ptr.hbm [resolvable:$true] %s235
          %238 = dma.vmem_to_hbm [thread:$0]  %s234, 128, %s236, %s221
        $region36: #{tpu_custom_call.1} parent=31 // pred_fallthru
          _
      $region32: #{tpu_custom_call.1} parent=5 // pred_fallthru
        _
      %p239 = scmp.le.s32.totalorder 2, %s12
      // Predicated region
      $region37: #{tpu_custom_call.1} parent=5 // pred_check
        %p240 = pneg %p239
      $region38: #{tpu_custom_call.1} parent=5 // pred_check_branch
        %242 = sbr.rel (%p240) target = $region40
      $region39: #{tpu_custom_call.1} parent=5 // pred_region
        %s243 = ssub.s32 %s12, 2
        // Predicated region
        $region41: #{tpu_custom_call.1} parent=39 // pred_check
          %p244 = pneg %p114
        $region42: #{tpu_custom_call.1} parent=39 // pred_check_branch
          %246 = sbr.rel (%p244) target = $region44
        $region43: #{tpu_custom_call.1} parent=39 // pred_region
          %s247 = sand.u32 %s99, 1
          %s248 = scalar_lea.sflag [#allocation3], %s247
          %s249 = sand.u32 %s99, 1
          %s250 = smul.addr %s249, 8
          %s251 = scalar_lea.vmem [#allocation2], %s250
          %253 = dma.done %s248, 128
        $region44: #{tpu_custom_call.1} parent=39 // pred_fallthru
          _
      $region40: #{tpu_custom_call.1} parent=5 // pred_fallthru
        _
    $region6: #{tpu_custom_call.1} parent=1 // loop_footer
      %s16 = sadd.s32 1, %s12
    $region7: #{tpu_custom_call.1} parent=1 // loop_footer_branch
      %11 = sbr.rel target = $region3
    $region8: #{tpu_custom_call.1} parent=1 // loop_exit
      _
    %254 = vsyncpa [#allocation3], 1
    %s255 = scalar_lea.sflag [#allocation3], 1
    %256 = vsyncpa %s255, 1

// kernel: tpu_custom_call.1
$region0: #{tpu_custom_call.1}
  #allocation0 [shape = 'u32[]', space=smem, size = 0x4, offset = 0x4, fixed_abs, tag = 'smem constant byte address 0x4 - core index']
  #allocation1 [shape = 'u32[72,128]{1,0:T(1,128)}', space=vmem, size = 0x9000, scoped, tag = 'internal scratch']
  %s0 = inlined_call_operand.vmem [shape: f32[16,32], index: 0, kind: input, shape index: {}]
  %s1 = inlined_call_operand.vmem [shape: f32[16,2], index: 1, kind: input, shape index: {}]
  %s2 = inlined_call_operand.vmem [shape: f32[2,32], index: 2, kind: input, shape index: {}]
  %s3 = inlined_call_operand.hbm [shape: f32[16,32], index: 3, kind: output, shape index: {}]
  %s4 = sld [smem:[#allocation0]]
  $region45: #{tpu_custom_call.1} parent=0
    _
  %s6 = ssub.s32 1, %s4
  %s7 = scalar_select 0, %s6, %s4
  $region1: #{tpu_custom_call.1} parent=0
    #allocation2 [shape = 'u8[8192]{0}', space=vmem, size = 0x2000, scoped, tag = 'output window, operand 0']
    #allocation3 [shape = 's32[2]{0}', space=sflag, size = 0x8, scoped, tag = 'scoped memory for tpu_custom_call.1']
    %8 = vsyncpa [#allocation3], 0
    %s9 = scalar_lea.sflag [#allocation3], 1
    %10 = vsyncpa %s9, 0
    loop: start=0, step=1, limit=4
    $region2: #{tpu_custom_call.1} parent=1 // loop_pre_header
      _
    $region3: #{tpu_custom_call.1} parent=1 // loop_header
      %s12 = sphi 0, %s16
      %p13 = scmp.ge.s32.totalorder %s12, 4
      %s22 = sphi 0, %s24
      %s25 = sphi 0, %s22
      %s26 = sphi 0, %s25
      %s42 = sphi 0, %s26
      %s48 = sphi 0, %s50
      %s51 = sphi 0, %s48
      %s52 = sphi 0, %s51
      %s68 = sphi 0, %s52
      %s72 = sphi 0, %s72
      %s74 = sphi 0, %s72
      %s75 = sphi 0, %s74
      %s89 = sphi 0, %s75
      %s95 = sphi 0, %s97
      %s98 = sphi 0, %s95
      %s99 = sphi 0, %s98
      %s115 = sphi 0, %s99
    $region4: #{tpu_custom_call.1} parent=1 // loop_header_branch
      %15 = sbr.rel (%p13) target = $region8
    $region5: #{tpu_custom_call.1} parent=1 // loop_body
      %s17 = ssub.s32 %s12, 1
      %s18 = ssub.s32 %s12, 2
      %s19 = sadd.s32 %s12, 1
      %s20 = ssub.s32 %s12, %s19
      %p21 = scmp.eq.s32.totalorder %s20, 0
      %s23 = sadd.s32 %s22, 1
      %s24 = scalar_select %p21, %s22, %s23
      %p27 = pneg %p21
      %p28 = scmp.eq.s32.totalorder %s12, 1
      %p29 = por %p27, %p28
      %p30 = scmp.ne.s32.totalorder %s22, %s25
      %p31 = scmp.eq.s32.totalorder %s12, 0
      %p32 = por %p30, %p31
      %p33 = scmp.ne.s32.totalorder %s22, %s25
      %p34 = scmp.eq.s32.totalorder %s17, 1
      %p35 = por %p33, %p34
      %p36 = scmp.ne.s32.totalorder %s25, %s26
      %p37 = scmp.eq.s32.totalorder %s17, 0
      %p38 = por %p36, %p37
      %p39 = scmp.ne.s32.totalorder %s25, %s26
      %p40 = scmp.eq.s32.totalorder %s18, 1
      %p41 = por %p39, %p40
      %p43 = scmp.ne.s32.totalorder %s26, %s42
      %p44 = scmp.eq.s32.totalorder %s18, 0
      %p45 = por %p43, %p44
      %s46 = ssub.s32 %s12, %s19
      %p47 = scmp.eq.s32.totalorder %s46, 0
      %s49 = sadd.s32 %s48, 1
      %s50 = scalar_select %p47, %s48, %s49
      %p53 = pneg %p47
      %p54 = scmp.eq.s32.totalorder %s12, 1
      %p55 = por %p53, %p54
      %p56 = scmp.ne.s32.totalorder %s48, %s51
      %p57 = scmp.eq.s32.totalorder %s12, 0
      %p58 = por %p56, %p57
      %p59 = scmp.ne.s32.totalorder %s48, %s51
      %p60 = scmp.eq.s32.totalorder %s17, 1
      %p61 = por %p59, %p60
      %p62 = scmp.ne.s32.totalorder %s51, %s52
      %p63 = scmp.eq.s32.totalorder %s17, 0
      %p64 = por %p62, %p63
      %p65 = scmp.ne.s32.totalorder %s51, %s52
      %p66 = scmp.eq.s32.totalorder %s18, 1
      %p67 = por %p65, %p66
      %p69 = scmp.ne.s32.totalorder %s52, %s68
      %p70 = scmp.eq.s32.totalorder %s18, 0
      %p71 = por %p69, %p70
      %s73 = sadd.s32 %s72, 1
      %p76 = scmp.eq.s32.totalorder %s12, 1
      %p77 = scmp.ne.s32.totalorder %s72, %s74
      %p78 = scmp.eq.s32.totalorder %s12, 0
      %p79 = por %p77, %p78
      %p80 = scmp.ne.s32.totalorder %s72, %s74
      %p81 = scmp.eq.s32.totalorder %s17, 1
      %p82 = por %p80, %p81
      %p83 = scmp.ne.s32.totalorder %s74, %s75
      %p84 = scmp.eq.s32.totalorder %s17, 0
      %p85 = por %p83, %p84
      %p86 = scmp.ne.s32.totalorder %s74, %s75
      %p87 = scmp.eq.s32.totalorder %s18, 1
      %p88 = por %p86, %p87
      %p90 = scmp.ne.s32.totalorder %s75, %s89
      %p91 = scmp.eq.s32.totalorder %s18, 0
      %p92 = por %p90, %p91
      %s93 = ssub.s32 %s12, %s19
      %p94 = scmp.eq.s32.totalorder %s93, 0
      %s96 = sadd.s32 %s95, 1
      %s97 = scalar_select %p94, %s95, %s96
      %p100 = pneg %p94
      %p101 = scmp.eq.s32.totalorder %s12, 1
      %p102 = por %p100, %p101
      %p103 = scmp.ne.s32.totalorder %s95, %s98
      %p104 = scmp.eq.s32.totalorder %s12, 0
      %p105 = por %p103, %p104
      %p106 = scmp.ne.s32.totalorder %s95, %s98
      %p107 = scmp.eq.s32.totalorder %s17, 1
      %p108 = por %p106, %p107
      %p109 = scmp.ne.s32.totalorder %s98, %s99
      %p110 = scmp.eq.s32.totalorder %s17, 0
      %p111 = por %p109, %p110
      %p112 = scmp.ne.s32.totalorder %s98, %s99
      %p113 = scmp.eq.s32.totalorder %s18, 1
      %p114 = por %p112, %p113
      %p116 = scmp.ne.s32.totalorder %s99, %s115
      %p117 = scmp.eq.s32.totalorder %s18, 0
      %p118 = por %p116, %p117
      %p119 = scmp.le.s32.totalorder 1, %s12
      %p120 = scmp.lt.s32.totalorder %s12, 3
      %p121 = pnand %p119, %p120
      %p122 = pneg %p121
      // Predicated region
      $region9: #{tpu_custom_call.1} parent=5 // pred_check
        _
      $region10: #{tpu_custom_call.1} parent=5 // pred_check_branch
        %124 = sbr.rel (%p121) target = $region12
      $region11: #{tpu_custom_call.1} parent=5 // pred_region
        %s125 = ssub.s32 %s12, 1
        // Predicated region
        $region13: #{tpu_custom_call.1} parent=11 // pred_check
          %p126 = pneg %p85
        $region14: #{tpu_custom_call.1} parent=11 // pred_check_branch
          %128 = sbr.rel (%p126) target = $region16
        $region15: #{tpu_custom_call.1} parent=11 // pred_region
          _
        $region16: #{tpu_custom_call.1} parent=11 // pred_fallthru
          _
      $region12: #{tpu_custom_call.1} parent=5 // pred_fallthru
        _
      %p129 = scmp.lt.s32.totalorder %s12, 2
      // Predicated region
      $region17: #{tpu_custom_call.1} parent=5 // pred_check
        %p130 = pneg %p129
      $region18: #{tpu_custom_call.1} parent=5 // pred_check_branch
        %132 = sbr.rel (%p130) target = $region20
      $region19: #{tpu_custom_call.1} parent=5 // pred_region
        // Predicated region
        $region21: #{tpu_custom_call.1} parent=19 // pred_check
          %p133 = pneg %p32
        $region22: #{tpu_custom_call.1} parent=19 // pred_check_branch
          %135 = sbr.rel (%p133) target = $region24
        $region23: #{tpu_custom_call.1} parent=19 // pred_region
          %p136 = scmp.lt.s32.totalorder %s12, 1
          %s137 = scalar_select %p136, %s12, 1
          %s138 = smul.addr %s137, 8
          %s139 = scalar_lea.vmem %s0, %s138
        $region24: #{tpu_custom_call.1} parent=19 // pred_fallthru
          _
        // Predicated region
        $region25: #{tpu_custom_call.1} parent=19 // pred_check
          %p140 = pneg %p58
        $region26: #{tpu_custom_call.1} parent=19 // pred_check_branch
          %142 = sbr.rel (%p140) target = $region28
        $region27: #{tpu_custom_call.1} parent=19 // pred_region
          %p143 = scmp.lt.s32.totalorder %s12, 1
          %s144 = scalar_select %p143, %s12, 1
          %s145 = smul.addr %s144, 8
          %s146 = scalar_lea.vmem %s1, %s145
        $region28: #{tpu_custom_call.1} parent=19 // pred_fallthru
          _
      $region20: #{tpu_custom_call.1} parent=5 // pred_fallthru
        _
      %p147 = scmp.le.s32.totalorder 1, %s12
      %p148 = scmp.lt.s32.totalorder %s12, 3
      %p149 = pnand %p147, %p148
      %p150 = pneg %p149
      // Predicated region
      $region29: #{tpu_custom_call.1} parent=5 // pred_check
        _
      $region30: #{tpu_custom_call.1} parent=5 // pred_check_branch
        %152 = sbr.rel (%p149) target = $region32
      $region31: #{tpu_custom_call.1} parent=5 // pred_region
        %s153 = ssub.s32 %s12, 1
        %p154 = scmp.lt.s32.totalorder %s17, 1
        %s155 = scalar_select %p154, %s17, 1
        %s156 = smul.addr %s155, 8
        %s157 = scalar_lea.vmem %s0, %s156
        %p158 = pneg %p38
        %p159 = pneg %p35
        %p160 = scmp.lt.s32.totalorder %s17, 1
        %s161 = scalar_select %p160, %s17, 1
        %s162 = smul.addr %s161, 8
        %s163 = scalar_lea.vmem %s1, %s162
        %p164 = pneg %p64
        %p165 = pneg %p61
        %p166 = pneg %p85
        %p167 = pneg %p82
        %p168 = pneg %p111
        %p169 = pneg %p108
        %s170 = sand.u32 %s98, 1
        %s171 = scalar_lea.sflag [#allocation3], %s170
        %s172 = sand.u32 %s98, 1
        %s173 = smul.addr %s172, 8
        %s174 = scalar_lea.vmem [#allocation2], %s173
        %p175 = scmp.lt.s32.totalorder %s17, 1
        %s176 = scalar_select %p175, %s17, 1
        %s177 = smul.addr %s176, 8
        %s178 = scalar_lea.vmem %s0, %s177
        %p179 = scmp.lt.s32.totalorder %s17, 1
        %s180 = scalar_select %p179, %s17, 1
        %s181 = smul.addr %s180, 8
        %s182 = scalar_lea.vmem %s1, %s181
        %v183 = vld [vmem:[%s182] sm:$0xff]
        %185 = vrot.lane.b32.xlu0 %v183, 1
        %v186 = vpop.permute.xlu0 %185
        %v188 = vsub.f32 %v183, %v186
        %v189 = vadd.f32 %v183, 1.0
        %v190 = vrcp.pop %v189
        %v191 = vmul.f32 %v189, %v190
        %v192 = vsub.f32 1.0, %v191
        %v193 = vmul.f32 %v190, %v192
        %v194 = vadd.f32 %v190, %v193
        %vm195 = vweird.f32 %v189
        %vm196 = vweird.f32 %v190
        %vm197 = vmor %vm195, %vm196
        %v198 = vsel %vm197, %v190, %v194
        %v199 = vand.u32 2147483647, %v189
        %vm200 = vcmp.eq.f32.partialorder %v199, 8.507059e+37
        %v201 = vand.u32 %v189, 2147483648
        %v202 = vor.u32 1.1754944e-38, %v201
        %v203 = vsel %vm200, %v202, %v198
        %v204 = vmul.f32 %v188, %v203
        %v205 = vld [vmem:[%s2] sm:$0x1]
        %v206 = vld [vmem:[%s2 + $0x1] sm:$0x1]
        %208 = vset.pattern.permute.xlu0 1
        %209 = vperm.xlu0 %208, %v204
        %v210 = vpop.permute.xlu0 %209
        %v212 = vperm.slane %v205, 0
        %v213 = vmul.f32 %v210, %v212
        %v214 = vperm.slane %v206, 0
        %v215 = vadd.f32 %v213, %v214
        %v216 = vld [vmem:[%s178] sm:$0xff]
        %v217 = vmul.f32 %v216, %v215
        %vm218 = vcmask 261120
        %219 = vst.msk [vmem:[%s174] sm:$0xff] %vm218, %v217
        %s220 = sand.u32 %s98, 1
        %s221 = scalar_lea.sflag [#allocation3], %s220
        %s222 = sand.u32 %s98, 1
        %s223 = smul.addr %s222, 8
        %s224 = scalar_lea.vmem [#allocation2], %s223
        // Predicated region
        $region33: #{tpu_custom_call.1} parent=31 // pred_check
          %p225 = pneg %p108
        $region34: #{tpu_custom_call.1} parent=31 // pred_check_branch
          %227 = sbr.rel (%p225) target = $region36
        $region35: #{tpu_custom_call.1} parent=31 // pred_region
          %229 = vsyncadd %s221, 0
          %s230 = smul.addr %s17, 8
          %s231 = scalar_lea.hbm %s3, %s230
          %s233 = sshll.u32 %s224, 4
          %s234 = int_to_ptr.vmem [resolvable:$true] %s233
          %s235 = sshll.u32 %s231, 4
          %s236 = int_to_ptr.hbm [resolvable:$true] %s235
          %238 = dma.vmem_to_hbm [thread:$0]  %s234, 128, %s236, %s221
        $region36: #{tpu_custom_call.1} parent=31 // pred_fallthru
          _
      $region32: #{tpu_custom_call.1} parent=5 // pred_fallthru
        _
      %p239 = scmp.le.s32.totalorder 2, %s12
      // Predicated region
      $region37: #{tpu_custom_call.1} parent=5 // pred_check
        %p240 = pneg %p239
      $region38: #{tpu_custom_call.1} parent=5 // pred_check_branch
        %242 = sbr.rel (%p240) target = $region40
      $region39: #{tpu_custom_call.1} parent=5 // pred_region
        %s243 = ssub.s32 %s12, 2
        // Predicated region
        $region41: #{tpu_custom_call.1} parent=39 // pred_check
          %p244 = pneg %p114
        $region42: #{tpu_custom_call.1} parent=39 // pred_check_branch
          %246 = sbr.rel (%p244) target = $region44
        $region43: #{tpu_custom_call.1} parent=39 // pred_region
          %s247 = sand.u32 %s99, 1
          %s248 = scalar_lea.sflag [#allocation3], %s247
          %s249 = sand.u32 %s99, 1
          %s250 = smul.addr %s249, 8
          %s251 = scalar_lea.vmem [#allocation2], %s250
          %253 = dma.done %s248, 128
        $region44: #{tpu_custom_call.1} parent=39 // pred_fallthru
          _
      $region40: #{tpu_custom_call.1} parent=5 // pred_fallthru
        _
    $region6: #{tpu_custom_call.1} parent=1 // loop_footer
      %s16 = sadd.s32 1, %s12
    $region7: #{tpu_custom_call.1} parent=1 // loop_footer_branch
      %11 = sbr.rel target = $region3
    $region8: #{tpu_custom_call.1} parent=1 // loop_exit
      _
    %254 = vsyncpa [#allocation3], 1
    %s255 = scalar_lea.sflag [#allocation3], 1
    %256 = vsyncpa %s255, 1

</llo_original>
